<compile_context>
chip_gen: v5e
topology: v5e:2x2
jax: 0.10.0
libtpu: 0.0.40
codegen_flags: <defaults>
</compile_context>

<pallas_src>
import jax
import jax.numpy as jnp
from jax.experimental import pallas as pl
from jax.experimental.pallas import tpu as pltpu

D_IN, D_H1, D_H2 = 82, 128, 32


def mlp_kernel(x_ref, w1_ref, b1_ref, w2_ref, b2_ref, w3_ref, b3_ref, o_ref):
    x = x_ref[...]                                                    # (TB, 82) bf16
    # Layer 1: bf16 MXU matmul, f32 accumulation; bias + ReLU on the VPU in f32.
    h1 = jnp.dot(x, w1_ref[...], preferred_element_type=jnp.float32) + b1_ref[...]
    h1 = jnp.maximum(h1, 0.0)                                         # (TB, 128) f32
    # Layer 2: cast activation to bf16 for a native-bf16 MXU pass.
    h2 = jnp.dot(h1.astype(jnp.bfloat16), w2_ref[...],
                 preferred_element_type=jnp.float32) + b2_ref[...]
    h2 = jnp.maximum(h2, 0.0)                                         # (TB, 32) f32
    # Layer 3 (out features = 1): VPU multiply + lane reduction instead of an
    # N=1 MXU matmul (which would use 1/128..1/256 of the MXU columns).
    z = jnp.sum(h2 * w3_ref[...], axis=-1, keepdims=True) + b3_ref[...]   # (TB, 1) f32
    # Sigmoid = 1 / (1 + exp(-z)); exp and approximate reciprocal both run on the EUP.
    o_ref[...] = pl.reciprocal(1.0 + jnp.exp(-z), approx=True).astype(o_ref.dtype)


def pretrain_model2_forward(x, params, *, block_b=2048):
    """x: (B, 82) float.  params: (w1(82,128), b1(1,128), w2(128,32), b2(1,32),
    w3(1,32) row, b3(1,1)).  Returns sigmoid output of shape (B, 1) float32."""
    w1, b1, w2, b2, w3, b3 = params
    B = x.shape[0]

    # bf16 for the MXU operands / dominant HBM stream; f32 elsewhere.
    x = x.astype(jnp.bfloat16)
    w1 = w1.astype(jnp.bfloat16)
    w2 = w2.astype(jnp.bfloat16)
    b1 = b1.astype(jnp.float32)
    b2 = b2.astype(jnp.float32)
    w3 = w3.astype(jnp.float32)
    b3 = b3.astype(jnp.float32)

    # Batch tile: block_b (multiple of 256 -> fills MXU M dim on v6e/v7x); clamp to B
    # for tiny batches (block shape == full dim is always legal).
    tb = B if B <= block_b else block_b
    n_blocks = pl.cdiv(B, tb)

    grid_spec = pltpu.PrefetchScalarGridSpec(
        num_scalar_prefetch=0,
        grid=(n_blocks,),
        in_specs=[
            pl.BlockSpec((tb, D_IN), lambda i: (i, 0)),   # x: tiled over batch (pipelined)
            pl.BlockSpec(w1.shape, lambda i: (0, 0)),     # weights/biases: VMEM-resident
            pl.BlockSpec(b1.shape, lambda i: (0, 0)),
            pl.BlockSpec(w2.shape, lambda i: (0, 0)),
            pl.BlockSpec(b2.shape, lambda i: (0, 0)),
            pl.BlockSpec(w3.shape, lambda i: (0, 0)),
            pl.BlockSpec(b3.shape, lambda i: (0, 0)),
        ],
        out_specs=pl.BlockSpec((tb, 1), lambda i: (i, 0)),
    )

    flops = 2 * B * (D_IN * D_H1 + D_H1 * D_H2 + D_H2)
    bytes_accessed = (
        B * D_IN * 2                      # x (bf16)
        + B * 4                           # output (f32)
        + (D_IN * D_H1 + D_H1 * D_H2) * 2 # bf16 weights
        + (D_H1 + D_H2 + D_H2 + 1) * 4    # f32 biases + w3 row
    )
    cost = pl.CostEstimate(flops=flops, transcendentals=2 * B,
                           bytes_accessed=bytes_accessed)

    return pl.pallas_call(
        mlp_kernel,
        out_shape=jax.ShapeDtypeStruct((B, 1), jnp.float32),
        grid_spec=grid_spec,
        compiler_params=pltpu.CompilerParams(
            dimension_semantics=("parallel",),   # megacore batch sharding on v7x
        ),
        cost_estimate=cost,
    )(x, w1, b1, w2, b2, w3, b3)


def init_params(key):
    """PyTorch nn.Linear default init: U(-1/sqrt(fan_in), +1/sqrt(fan_in)).
    w1, w2 stored as (in, out) (= torch W^T); w3 stored as a (1, 32) row."""
    specs = [(82, 128), (128, 32), (32, 1)]
    params = []
    for li, (fan_in, fan_out) in enumerate(specs):
        key, kw, kb = jax.random.split(key, 3)
        bound = 1.0 / jnp.sqrt(jnp.float32(fan_in))
        if li < 2:
            w = jax.random.uniform(kw, (fan_in, fan_out), jnp.float32, -bound, bound)
        else:
            w = jax.random.uniform(kw, (1, fan_in), jnp.float32, -bound, bound)  # (1, 32)
        b = jax.random.uniform(kb, (1, fan_out), jnp.float32, -bound, bound)
        params.extend([w, b])
    return tuple(params)


def reference_forward(x, params):
    w1, b1, w2, b2, w3, b3 = params
    h1 = jnp.maximum(x @ w1 + b1, 0.0)
    h2 = jnp.maximum(h1 @ w2 + b2, 0.0)
    z = h2 @ w3.T + b3
    return 1.0 / (1.0 + jnp.exp(-z))


if __name__ == "__main__":
    key = jax.random.PRNGKey(0)
    kx, kp = jax.random.split(key)
    params = init_params(kp)

    # Small single-block check (B=8 -> one grid step, tb == B).
    B = 8
    x = jax.random.normal(kx, (B, 82), jnp.float32)
    y = jax.block_until_ready(pretrain_model2_forward(x, params))
    y_ref = reference_forward(x, params)
    assert y.shape == (B, 1), y.shape
    # bf16 matmuls + approx reciprocal => looser tolerance vs the pure-f32 reference.
    assert jnp.allclose(y, y_ref, atol=2e-2, rtol=2e-2), "mismatch vs reference (B=8)"

    # Multi-block check exercising the pipelined grid (B=512, TB=256 -> grid=(2,)).
    B2 = 512
    x2 = jax.random.normal(jax.random.PRNGKey(1), (B2, 82), jnp.float32)
    y2 = jax.block_until_ready(pretrain_model2_forward(x2, params, block_b=256))
    y2_ref = reference_forward(x2, params)
    assert y2.shape == (B2, 1), y2.shape
    assert jnp.allclose(y2, y2_ref, atol=2e-2, rtol=2e-2), "mismatch vs reference (B=512)"

    print("KERNEL_OK")
</pallas_src>

<mosaic_0001>
module attributes {stable_mosaic.version = 11 : i64} {
  func.func @mlp_kernel(%arg0: i32, %arg1: memref<8x82xbf16, #tpu.memory_space<vmem>>, %arg2: memref<82x128xbf16, #tpu.memory_space<vmem>>, %arg3: memref<1x128xf32, #tpu.memory_space<vmem>>, %arg4: memref<128x32xbf16, #tpu.memory_space<vmem>>, %arg5: memref<1x32xf32, #tpu.memory_space<vmem>>, %arg6: memref<1x32xf32, #tpu.memory_space<vmem>>, %arg7: memref<1x1xf32, #tpu.memory_space<vmem>>, %arg8: memref<8x1xf32, #tpu.memory_space<vmem>>) attributes {dimension_semantics = [#tpu.dimension_semantics<parallel>], iteration_bounds = array<i64: 1>, scalar_prefetch = 0 : i64, scratch_operands = 0 : i64, tpu.core_type = #tpu.core_type<tc>, window_params = [{transform_indices = @transform_0, window_bounds = array<i64: 8, 82>}, {pipeline_mode = #tpu.pipeline_mode<synchronous>, transform_indices = @transform_1, window_bounds = array<i64: 82, 128>}, {pipeline_mode = #tpu.pipeline_mode<synchronous>, transform_indices = @transform_2, window_bounds = array<i64: 1, 128>}, {pipeline_mode = #tpu.pipeline_mode<synchronous>, transform_indices = @transform_3, window_bounds = array<i64: 128, 32>}, {pipeline_mode = #tpu.pipeline_mode<synchronous>, transform_indices = @transform_4, window_bounds = array<i64: 1, 32>}, {pipeline_mode = #tpu.pipeline_mode<synchronous>, transform_indices = @transform_5, window_bounds = array<i64: 1, 32>}, {pipeline_mode = #tpu.pipeline_mode<synchronous>, transform_indices = @transform_6, window_bounds = array<i64: 1, 1>}, {transform_indices = @transform_7, window_bounds = array<i64: 8, 1>}]} {
    %c0 = arith.constant 0 : index
    %c0_0 = arith.constant 0 : index
    %0 = vector.load %arg1[%c0, %c0_0] : memref<8x82xbf16, #tpu.memory_space<vmem>>, vector<8x82xbf16>
    %c0_1 = arith.constant 0 : index
    %c0_2 = arith.constant 0 : index
    %1 = vector.load %arg2[%c0_1, %c0_2] : memref<82x128xbf16, #tpu.memory_space<vmem>>, vector<82x128xbf16>
    %cst = arith.constant dense<0.000000e+00> : vector<8x128xf32>
    %2 = tpu.matmul %0, %1, %cst {dimension_numbers = #tpu.dot_dimension_numbers<[1], [0], [0], [1], [0, 0, 1, 1], [], []>} : vector<8x82xbf16>, vector<82x128xbf16>, vector<8x128xf32> -> vector<8x128xf32>
    %c0_3 = arith.constant 0 : index
    %c0_4 = arith.constant 0 : index
    %3 = vector.load %arg3[%c0_3, %c0_4] : memref<1x128xf32, #tpu.memory_space<vmem>>, vector<1x128xf32>
    %4 = vector.broadcast %3 : vector<1x128xf32> to vector<8x128xf32>
    %5 = arith.addf %2, %4 : vector<8x128xf32>
    %cst_5 = arith.constant 0.000000e+00 : f32
    %6 = vector.broadcast %cst_5 : f32 to vector<8x128xf32>
    %7 = arith.maximumf %5, %6 : vector<8x128xf32>
    %8 = arith.truncf %7 : vector<8x128xf32> to vector<8x128xbf16>
    %c0_6 = arith.constant 0 : index
    %c0_7 = arith.constant 0 : index
    %9 = vector.load %arg4[%c0_6, %c0_7] : memref<128x32xbf16, #tpu.memory_space<vmem>>, vector<128x32xbf16>
    %cst_8 = arith.constant dense<0.000000e+00> : vector<8x32xf32>
    %10 = tpu.matmul %8, %9, %cst_8 {dimension_numbers = #tpu.dot_dimension_numbers<[1], [0], [0], [1], [0, 0, 1, 1], [], []>} : vector<8x128xbf16>, vector<128x32xbf16>, vector<8x32xf32> -> vector<8x32xf32>
    %c0_9 = arith.constant 0 : index
    %c0_10 = arith.constant 0 : index
    %11 = vector.load %arg5[%c0_9, %c0_10] : memref<1x32xf32, #tpu.memory_space<vmem>>, vector<1x32xf32>
    %12 = vector.broadcast %11 : vector<1x32xf32> to vector<8x32xf32>
    %13 = arith.addf %10, %12 : vector<8x32xf32>
    %cst_11 = arith.constant 0.000000e+00 : f32
    %14 = vector.broadcast %cst_11 : f32 to vector<8x32xf32>
    %15 = arith.maximumf %13, %14 : vector<8x32xf32>
    %c0_12 = arith.constant 0 : index
    %c0_13 = arith.constant 0 : index
    %16 = vector.load %arg6[%c0_12, %c0_13] : memref<1x32xf32, #tpu.memory_space<vmem>>, vector<1x32xf32>
    %17 = vector.broadcast %16 : vector<1x32xf32> to vector<8x32xf32>
    %18 = arith.mulf %15, %17 : vector<8x32xf32>
    %cst_14 = arith.constant dense<0.000000e+00> : vector<8xf32>
    %19 = vector.multi_reduction <add>, %18, %cst_14 [1] : vector<8x32xf32> to vector<8xf32>
    %20 = vector.shape_cast %19 : vector<8xf32> to vector<8x1xf32>
    %c0_15 = arith.constant 0 : index
    %c0_16 = arith.constant 0 : index
    %21 = vector.load %arg7[%c0_15, %c0_16] : memref<1x1xf32, #tpu.memory_space<vmem>>, vector<1x1xf32>
    %22 = vector.broadcast %21 : vector<1x1xf32> to vector<8x1xf32>
    %23 = arith.addf %20, %22 : vector<8x1xf32>
    %cst_17 = arith.constant 0.000000e+00 : f32
    %24 = vector.broadcast %cst_17 : f32 to vector<8x1xf32>
    %25 = arith.subf %24, %23 : vector<8x1xf32>
    %26 = math.exp %25 : vector<8x1xf32>
    %cst_18 = arith.constant 1.000000e+00 : f32
    %27 = vector.broadcast %cst_18 : f32 to vector<8x1xf32>
    %28 = arith.addf %27, %26 : vector<8x1xf32>
    %29 = tpu.reciprocal %28 {approx = true} : vector<8x1xf32> -> vector<8x1xf32>
    %c0_19 = arith.constant 0 : index
    %c0_20 = arith.constant 0 : index
    %30 = vector.load %arg8[%c0_19, %c0_20] : memref<8x1xf32, #tpu.memory_space<vmem>>, vector<8x1xf32>
    tpu.vector_store %arg8[%c0_19, %c0_20], %29 {strides = array<i32>} : memref<8x1xf32, #tpu.memory_space<vmem>>, vector<8x1xf32>,
    return
  }
  func.func @transform_0(%arg0: i32) -> (i32, i32) {
    %c0_i32 = arith.constant 0 : i32
    %c0_i32_0 = arith.constant 0 : i32
    return %arg0, %c0_i32 : i32, i32
  }
  func.func @transform_1(%arg0: i32) -> (i32, i32) {
    %c0_i32 = arith.constant 0 : i32
    %c0_i32_0 = arith.constant 0 : i32
    %c0_i32_1 = arith.constant 0 : i32
    return %c0_i32, %c0_i32_0 : i32, i32
  }
  func.func @transform_2(%arg0: i32) -> (i32, i32) {
    %c0_i32 = arith.constant 0 : i32
    %c0_i32_0 = arith.constant 0 : i32
    %c0_i32_1 = arith.constant 0 : i32
    return %c0_i32, %c0_i32_0 : i32, i32
  }
  func.func @transform_3(%arg0: i32) -> (i32, i32) {
    %c0_i32 = arith.constant 0 : i32
    %c0_i32_0 = arith.constant 0 : i32
    %c0_i32_1 = arith.constant 0 : i32
    return %c0_i32, %c0_i32_0 : i32, i32
  }
  func.func @transform_4(%arg0: i32) -> (i32, i32) {
    %c0_i32 = arith.constant 0 : i32
    %c0_i32_0 = arith.constant 0 : i32
    %c0_i32_1 = arith.constant 0 : i32
    return %c0_i32, %c0_i32_0 : i32, i32
  }
  func.func @transform_5(%arg0: i32) -> (i32, i32) {
    %c0_i32 = arith.constant 0 : i32
    %c0_i32_0 = arith.constant 0 : i32
    %c0_i32_1 = arith.constant 0 : i32
    return %c0_i32, %c0_i32_0 : i32, i32
  }
  func.func @transform_6(%arg0: i32) -> (i32, i32) {
    %c0_i32 = arith.constant 0 : i32
    %c0_i32_0 = arith.constant 0 : i32
    %c0_i32_1 = arith.constant 0 : i32
    return %c0_i32, %c0_i32_0 : i32, i32
  }
  func.func @transform_7(%arg0: i32) -> (i32, i32) {
    %c0_i32 = arith.constant 0 : i32
    %c0_i32_0 = arith.constant 0 : i32
    return %arg0, %c0_i32 : i32, i32
  }
}

</mosaic_0001>

<llo_original>
// kernel: tpu_custom_call.1
$region0: #{tpu_custom_call.1}
  #allocation0 [shape = 'u32[]', space=smem, size = 0x4, offset = 0x4, fixed_abs, tag = 'smem constant byte address 0x4 - core index']
  #allocation1 [shape = 'u32[72,128]{1,0:T(1,128)}', space=vmem, size = 0x9000, scoped, tag = 'internal scratch']
  #allocation2 [shape = 'f32[1,1]{1,0:T(1,128)S(1)}', space=vmem, size = 0x200, scoped, tag = 'scoped memory for tpu_custom_call.1']
  %s0 = inlined_call_operand.vmem [shape: bf16[8,82], index: 0, kind: input, shape index: {}]
  %s1 = inlined_call_operand.vmem [shape: bf16[82,128], index: 1, kind: input, shape index: {}]
  %s2 = inlined_call_operand.vmem [shape: f32[1,128], index: 2, kind: input, shape index: {}]
  %s3 = inlined_call_operand.vmem [shape: bf16[128,32], index: 3, kind: input, shape index: {}]
  %s4 = inlined_call_operand.vmem [shape: f32[1,32], index: 4, kind: input, shape index: {}]
  %s5 = inlined_call_operand.vmem [shape: f32[1,32], index: 5, kind: input, shape index: {}]
  %s6 = inlined_call_operand.<no memory space> [shape: f32[1,1], index: 6, kind: input, shape index: {}]
  %s7 = inlined_call_operand.vmem [shape: f32[8,1], index: 7, kind: output, shape index: {}]
  %s8 = sld [smem:[#allocation0]]
  $region38: #{tpu_custom_call.1} parent=0
    _
  %s10 = ssub.s32 1, %s8
  %s11 = scalar_select 0, %s10, %s8
  %v12 = vstv %s6
  %13 = vst [vmem:[#allocation2] sm:$0x1] %v12
  // Predicated region
  $region2: #{tpu_custom_call.1} parent=0 // pred_check
    _
  $region3: #{tpu_custom_call.1} parent=0 // pred_check_branch
    %15 = sbr.rel (0) target = $region5
  $region4: #{tpu_custom_call.1} parent=0 // pred_region
    _
  $region5: #{tpu_custom_call.1} parent=0 // pred_fallthru
    _
  // Predicated region
  $region6: #{tpu_custom_call.1} parent=0 // pred_check
    _
  $region7: #{tpu_custom_call.1} parent=0 // pred_check_branch
    %17 = sbr.rel (0) target = $region9
  $region8: #{tpu_custom_call.1} parent=0 // pred_region
    _
  $region9: #{tpu_custom_call.1} parent=0 // pred_fallthru
    _
  // Predicated region
  $region10: #{tpu_custom_call.1} parent=0 // pred_check
    _
  $region11: #{tpu_custom_call.1} parent=0 // pred_check_branch
    %19 = sbr.rel (0) target = $region13
  $region12: #{tpu_custom_call.1} parent=0 // pred_region
    _
  $region13: #{tpu_custom_call.1} parent=0 // pred_fallthru
    _
  // Predicated region
  $region14: #{tpu_custom_call.1} parent=0 // pred_check
    _
  $region15: #{tpu_custom_call.1} parent=0 // pred_check_branch
    %21 = sbr.rel (0) target = $region17
  $region16: #{tpu_custom_call.1} parent=0 // pred_region
    _
  $region17: #{tpu_custom_call.1} parent=0 // pred_fallthru
    _
  // Predicated region
  $region18: #{tpu_custom_call.1} parent=0 // pred_check
    _
  $region19: #{tpu_custom_call.1} parent=0 // pred_check_branch
    %23 = sbr.rel (0) target = $region21
  $region20: #{tpu_custom_call.1} parent=0 // pred_region
    _
  $region21: #{tpu_custom_call.1} parent=0 // pred_fallthru
    _
  // Predicated region
  $region22: #{tpu_custom_call.1} parent=0 // pred_check
    _
  $region23: #{tpu_custom_call.1} parent=0 // pred_check_branch
    %25 = sbr.rel (0) target = $region25
  $region24: #{tpu_custom_call.1} parent=0 // pred_region
    _
  $region25: #{tpu_custom_call.1} parent=0 // pred_fallthru
    _
  // Predicated region
  $region26: #{tpu_custom_call.1} parent=0 // pred_check
    _
  $region27: #{tpu_custom_call.1} parent=0 // pred_check_branch
    %27 = sbr.rel (0) target = $region29
  $region28: #{tpu_custom_call.1} parent=0 // pred_region
    _
  $region29: #{tpu_custom_call.1} parent=0 // pred_fallthru
    _
  %v29 = vld [vmem:[%s0] sm:$0xf]
  %v30 = vld [vmem:[%s1] sm:$0xf]
  %v31 = vld [vmem:[%s1 + $0x4] sm:$0xf]
  %v32 = vld [vmem:[%s1 + $0x8] sm:$0xf]
  %v33 = vld [vmem:[%s1 + $0xc] sm:$0xf]
  %v34 = vld [vmem:[%s1 + $0x10] sm:$0xf]
  %v35 = vld [vmem:[%s1 + $0x14] sm:$0xf]
  %v36 = vld [vmem:[%s1 + $0x18] sm:$0xf]
  %v37 = vld [vmem:[%s1 + $0x1c] sm:$0xf]
  %v38 = vld [vmem:[%s1 + $0x20] sm:$0xf]
  %v39 = vld [vmem:[%s1 + $0x24] sm:$0xf]
  %v40 = vld [vmem:[%s1 + $0x28] sm:$0x1]
  %v41 = vld [vmem:[%s2] sm:$0x1]
  %v43 = vperm.slane %v41, 0
  %v56 = vunpack.c.l.b16 %v30
  %v57 = vunpack.c.l.b16 %v31
  %v58 = vunpack.c.l.b16 %v32
  %v59 = vunpack.c.l.b16 %v33
  %v60 = vunpack.c.l.b16 %v34
  %v61 = vunpack.c.l.b16 %v35
  %v62 = vunpack.c.l.b16 %v36
  %v63 = vunpack.c.l.b16 %v37
  %v64 = vunpack.c.l.b16 %v38
  %v65 = vunpack.c.l.b16 %v39
  %v66 = vunpack.c.l.b16 %v40
  %v67 = vpack.c.b16 %v57, %v56
  %v68 = vpack.c.b16 %v59, %v58
  %v69 = vpack.c.b16 %v61, %v60
  %v70 = vpack.c.b16 %v63, %v62
  %v71 = vpack.c.b16 %v65, %v64
  %v72 = vpack.c.b16 %v66, %v66
  %vm78 = vcmask 670720
  %v80 = vsel %vm78, %v29, 0
  %vm82 = vcmask 1040384
  %v84 = vsel %vm82, %v72, 0
  %86 = vmatpush.bf16.msra.mxu0 0
  %87 = vmatpush.bf16.msra.mxu0 0
  %88 = vmatpush.bf16.msra.mxu0 %v84
  %89 = vmatpush.bf16.msra.mxu0 %v71
  %90 = vmatpush.bf16.msra.mxu0 %v70
  %91 = vmatpush.bf16.msra.mxu0 %v69
  %92 = vmatpush.bf16.msra.mxu0 %v68
  %93 = vmatpush.bf16.msra.mxu0 %v67
  %94 = vmatmul.bf16.gmra.mxu0 %v80
  %v95 = vpop.f32.mrf.mxu0
  %v96 = vadd.f32 %v43, %v95
  %v97 = vpop.f32.mrf.mxu0
  %98 = vdwg.mxu0
  %v99 = vmax.f32 %v96, 0.0
  %v100 = vpack.c.bf16 %v99, %v99
  %v101 = vld [vmem:[%s3] sm:$0xf]
  %v102 = vld [vmem:[%s3 + $0x4] sm:$0xf]
  %v103 = vld [vmem:[%s3 + $0x8] sm:$0xf]
  %v104 = vld [vmem:[%s3 + $0xc] sm:$0xf]
  %v105 = vld [vmem:[%s3 + $0x10] sm:$0xf]
  %v106 = vld [vmem:[%s3 + $0x14] sm:$0xf]
  %v107 = vld [vmem:[%s3 + $0x18] sm:$0xf]
  %v108 = vld [vmem:[%s3 + $0x1c] sm:$0xf]
  %v109 = vld [vmem:[%s3 + $0x20] sm:$0xf]
  %v110 = vld [vmem:[%s3 + $0x24] sm:$0xf]
  %v111 = vld [vmem:[%s3 + $0x28] sm:$0xf]
  %v112 = vld [vmem:[%s3 + $0x2c] sm:$0xf]
  %v113 = vld [vmem:[%s3 + $0x30] sm:$0xf]
  %v114 = vld [vmem:[%s3 + $0x34] sm:$0xf]
  %v115 = vld [vmem:[%s3 + $0x38] sm:$0xf]
  %v116 = vld [vmem:[%s3 + $0x3c] sm:$0xf]
  %v117 = vld [vmem:[%s4] sm:$0x1]
  %v119 = vperm.slane %v117, 0
  %v137 = vunpack.c.l.b16 %v101
  %v138 = vunpack.c.l.b16 %v102
  %v139 = vunpack.c.l.b16 %v103
  %v140 = vunpack.c.l.b16 %v104
  %v141 = vunpack.c.l.b16 %v105
  %v142 = vunpack.c.l.b16 %v106
  %v143 = vunpack.c.l.b16 %v107
  %v144 = vunpack.c.l.b16 %v108
  %v145 = vunpack.c.l.b16 %v109
  %v146 = vunpack.c.l.b16 %v110
  %v147 = vunpack.c.l.b16 %v111
  %v148 = vunpack.c.l.b16 %v112
  %v149 = vunpack.c.l.b16 %v113
  %v150 = vunpack.c.l.b16 %v114
  %v151 = vunpack.c.l.b16 %v115
  %v152 = vunpack.c.l.b16 %v116
  %v153 = vpack.c.b16 %v138, %v137
  %v154 = vpack.c.b16 %v140, %v139
  %v155 = vpack.c.b16 %v142, %v141
  %v156 = vpack.c.b16 %v144, %v143
  %v157 = vpack.c.b16 %v146, %v145
  %v158 = vpack.c.b16 %v148, %v147
  %v159 = vpack.c.b16 %v150, %v149
  %v160 = vpack.c.b16 %v152, %v151
  %169 = vmatpush.bf16.msra.mxu0 %v160
  %170 = vmatpush.bf16.msra.mxu0 %v159
  %171 = vmatpush.bf16.msra.mxu0 %v158
  %172 = vmatpush.bf16.msra.mxu0 %v157
  %173 = vmatpush.bf16.msra.mxu0 %v156
  %174 = vmatpush.bf16.msra.mxu0 %v155
  %175 = vmatpush.bf16.msra.mxu0 %v154
  %176 = vmatpush.bf16.msra.mxu0 %v153
  %177 = vmatmul.bf16.gmra.mxu0 %v100
  %v178 = vpop.f32.mrf.mxu0
  %v179 = vadd.f32 %v119, %v178
  %v180 = vpop.f32.mrf.mxu0
  %181 = vdwg.mxu0
  %v182 = vmax.f32 %v179, 0.0
  %v183 = vld [vmem:[%s5] sm:$0x1]
  %v185 = vperm.slane %v183, 0
  %v187 = vmul.f32 %v182, %v185
  %vm188 = vcmask 261120
  %v189 = vsel %vm188, %v187, 0.0
  %190 = vadd.xlane.f32.xlu0 %v189
  %v191 = vpop.xlane.xlu0 %190
  %v192 = vld [vmem:[#allocation2] sm:$0x1]
  %v194 = vperm.slane %v192, 0
  %v196 = vadd.f32 %v191, %v194
  %v197 = vsub.f32 0.0, %v196
  %v198 = vmul.f32 %v197, 1.442695
  %v199 = vpow.pop %v198
  %v200 = vadd.f32 %v199, 1.0
  %v201 = vrcp.pop %v200
  %vm202 = vcmask 7168
  %203 = vst.msk [vmem:[%s7] sm:$0xff] %vm202, %v201
  // Predicated region
  $region30: #{tpu_custom_call.1} parent=0 // pred_check
    _
  $region31: #{tpu_custom_call.1} parent=0 // pred_check_branch
    %205 = sbr.rel (0) target = $region33
  $region32: #{tpu_custom_call.1} parent=0 // pred_region
    _
  $region33: #{tpu_custom_call.1} parent=0 // pred_fallthru
    _
  // Predicated region
  $region34: #{tpu_custom_call.1} parent=0 // pred_check
    _
  $region35: #{tpu_custom_call.1} parent=0 // pred_check_branch
    %207 = sbr.rel (0) target = $region37
  $region36: #{tpu_custom_call.1} parent=0 // pred_region
    _
  $region37: #{tpu_custom_call.1} parent=0 // pred_fallthru
    _

</llo_original>
